<compile_context>
chip_gen: v6e
topology: v6e:2x2x1
jax: 0.10.0
libtpu: 0.0.40
codegen_flags: <defaults>
</compile_context>

<pallas_src>
import jax
import jax.numpy as jnp
from jax.experimental import pallas as pl
from jax.experimental.pallas import tpu as pltpu

_SUBLANE = 8
_LANE = 128
_MAX_BLOCK_N = 2048  # lanes per grid step (64 KiB/input block at f32, F_pad=8)


def _round_up(x, m):
    return ((x + m - 1) // m) * m


def mf_dot_kernel(u_ref, i_ref, o_ref):
    # Hot path: elementwise multiply (VPU) + sublane reduction over the
    # (padded) factor axis.  Inputs are (F_pad, BN); output is a lane-dense
    # (1, BN) slab -> unmasked full-width vector stores.
    prod = u_ref[...] * i_ref[...]
    o_ref[...] = jnp.sum(prod, axis=0, keepdims=True).astype(o_ref.dtype)


def recommender_forward(user_factors, item_factors, user_ids, item_ids,
                        *, use_pallas=True):
    """Equivalent of Recommender.forward(user, item).

    user_factors: (user_count, F) float32   -- nn.Embedding(user_count, F).weight
    item_factors: (item_count, F) float32   -- nn.Embedding(item_count, F).weight
    user_ids, item_ids: (N,) int32 indices
    returns: (N,) float32
    """
    # Embedding lookup (gather) is glue; done in plain JAX / XLA.
    u = jnp.take(user_factors, user_ids, axis=0)    # (N, F)
    it = jnp.take(item_factors, item_ids, axis=0)   # (N, F)
    n, f = u.shape

    if not use_pallas:
        # For tiny N a pallas_call is pure fixed cost (~0.35us/grid step);
        # let XLA fuse gather + mul + sum instead.
        return jnp.sum(u * it, axis=1)

    # Transposed, lane-dense layout: factors on sublanes, batch on lanes.
    f_pad = _round_up(f, _SUBLANE)
    n_pad = _round_up(max(n, 1), _LANE)
    if n_pad <= 4096:
        bn = n_pad                      # single block (still lane-dense)
    else:
        bn = _MAX_BLOCK_N
        n_pad = _round_up(n_pad, bn)    # grid of n_pad // bn blocks

    u_t = jnp.pad(u.T, ((0, f_pad - f), (0, n_pad - n)))   # (F_pad, N_pad)
    i_t = jnp.pad(it.T, ((0, f_pad - f), (0, n_pad - n)))  # (F_pad, N_pad)

    out = pl.pallas_call(
        mf_dot_kernel,
        out_shape=jax.ShapeDtypeStruct((1, n_pad), user_factors.dtype),
        grid=(n_pad // bn,),
        in_specs=[
            pl.BlockSpec((f_pad, bn), lambda j: (0, j)),
            pl.BlockSpec((f_pad, bn), lambda j: (0, j)),
        ],
        out_specs=pl.BlockSpec((1, bn), lambda j: (0, j)),
        compiler_params=pltpu.CompilerParams(
            dimension_semantics=("parallel",),
        ),
    )(u_t, i_t)

    # Trim the zero-padded lanes.
    return out[0, :n]


if __name__ == "__main__":
    key = jax.random.PRNGKey(0)
    k_uemb, k_iemb, k_uid, k_iid = jax.random.split(key, 4)

    # Small, deterministic synthetic setup consistent with the module:
    # Recommender(users=user_count, items=item_count, factors=5) and
    # 50 random user/item index pairs.
    user_count, item_count, factors, n = 20, 30, 5, 50

    # nn.Embedding default init ~ N(0, 1)
    user_factors = jax.random.normal(k_uemb, (user_count, factors), jnp.float32)
    item_factors = jax.random.normal(k_iemb, (item_count, factors), jnp.float32)

    users = jax.random.randint(k_uid, (n,), 0, user_count, dtype=jnp.int32)
    items = jax.random.randint(k_iid, (n,), 0, item_count, dtype=jnp.int32)

    # Exercise the Pallas path explicitly (at this toy scale the use_pallas=False
    # fused-XLA path would be faster in production).
    out = recommender_forward(user_factors, item_factors, users, items,
                              use_pallas=True)
    out = jax.block_until_ready(out)

    # Pure-JAX reference check of the forward semantics.
    ref = jnp.sum(user_factors[users] * item_factors[items], axis=1)
    assert out.shape == (n,)
    assert jnp.allclose(out, ref, atol=1e-5), "mismatch vs reference"

    print("KERNEL_OK")
</pallas_src>

<mosaic_0001>
module attributes {stable_mosaic.version = 11 : i64} {
  func.func @mf_dot_kernel(%arg0: i32, %arg1: memref<8x128xf32, #tpu.memory_space<vmem>>, %arg2: memref<8x128xf32, #tpu.memory_space<vmem>>, %arg3: memref<1x128xf32, #tpu.memory_space<vmem>>) attributes {dimension_semantics = [#tpu.dimension_semantics<parallel>], iteration_bounds = array<i64: 1>, scalar_prefetch = 0 : i64, scratch_operands = 0 : i64, tpu.core_type = #tpu.core_type<tc>, window_params = [{transform_indices = @transform_0, window_bounds = array<i64: 8, 128>}, {transform_indices = @transform_1, window_bounds = array<i64: 8, 128>}, {transform_indices = @transform_2, window_bounds = array<i64: 1, 128>}]} {
    %c0 = arith.constant 0 : index
    %c0_0 = arith.constant 0 : index
    %0 = vector.load %arg1[%c0, %c0_0] : memref<8x128xf32, #tpu.memory_space<vmem>>, vector<8x128xf32>
    %c0_1 = arith.constant 0 : index
    %c0_2 = arith.constant 0 : index
    %1 = vector.load %arg2[%c0_1, %c0_2] : memref<8x128xf32, #tpu.memory_space<vmem>>, vector<8x128xf32>
    %2 = arith.mulf %0, %1 : vector<8x128xf32>
    %cst = arith.constant dense<0.000000e+00> : vector<128xf32>
    %3 = vector.multi_reduction <add>, %2, %cst [0] : vector<8x128xf32> to vector<128xf32>
    %4 = vector.shape_cast %3 : vector<128xf32> to vector<1x128xf32>
    %c0_3 = arith.constant 0 : index
    %c0_4 = arith.constant 0 : index
    %5 = vector.load %arg3[%c0_3, %c0_4] : memref<1x128xf32, #tpu.memory_space<vmem>>, vector<1x128xf32>
    tpu.vector_store %arg3[%c0_3, %c0_4], %4 {strides = array<i32>} : memref<1x128xf32, #tpu.memory_space<vmem>>, vector<1x128xf32>,
    return
  }
  func.func @transform_0(%arg0: i32) -> (i32, i32) {
    %c0_i32 = arith.constant 0 : i32
    %c0_i32_0 = arith.constant 0 : i32
    return %c0_i32, %arg0 : i32, i32
  }
  func.func @transform_1(%arg0: i32) -> (i32, i32) {
    %c0_i32 = arith.constant 0 : i32
    %c0_i32_0 = arith.constant 0 : i32
    return %c0_i32, %arg0 : i32, i32
  }
  func.func @transform_2(%arg0: i32) -> (i32, i32) {
    %c0_i32 = arith.constant 0 : i32
    %c0_i32_0 = arith.constant 0 : i32
    return %c0_i32, %arg0 : i32, i32
  }
}

</mosaic_0001>

<llo_original>
// kernel: tpu_custom_call.1
$region0: #{tpu_custom_call.1}
  #allocation0 [shape = 'u32[]', space=smem, size = 0x4, offset = 0x4, fixed_abs, tag = 'smem constant byte address 0x4 - core index']
  #allocation1 [shape = 'u32[144,128]{1,0:T(1,128)}', space=vmem, size = 0x12000, scoped, tag = 'internal scratch']
  %s0 = inlined_call_operand.hbm [shape: f32[8,128], index: 0, kind: input, shape index: {}]
  %s1 = inlined_call_operand.hbm [shape: f32[8,128], index: 1, kind: input, shape index: {}]
  %s2 = inlined_call_operand.hbm [shape: f32[1,128], index: 2, kind: output, shape index: {}]
  %s3 = sld [smem:[#allocation0]]
  $region26: #{tpu_custom_call.1} parent=0
    _
  %s5 = ssub.s32 1, %s3
  %s6 = scalar_select 0, %s5, %s3
  $region1: #{tpu_custom_call.1} parent=0
    #allocation2 [shape = 'u8[4096]{0}', space=vmem, size = 0x1000, scoped, tag = 'input window, operand 0, single buffered']
    #allocation3 [shape = 's32[1]{0}', space=sflag, size = 0x4, scoped, tag = 'scoped memory for tpu_custom_call.1']
    #allocation4 [shape = 's32[1]{0}', space=sflag, size = 0x4, scoped, tag = 'scoped memory for tpu_custom_call.1']
    #allocation5 [shape = 'u8[4096]{0}', space=vmem, size = 0x1000, scoped, tag = 'input window, operand 1, single buffered']
    #allocation6 [shape = 's32[1]{0}', space=sflag, size = 0x4, scoped, tag = 'scoped memory for tpu_custom_call.1']
    #allocation7 [shape = 'u8[512]{0}', space=vmem, size = 0x400, scoped, tag = 'output window, operand 0, single buffered']
    %7 = vsyncpa [#allocation3], 0
    %8 = vsyncpa [#allocation6], 0
    %9 = vsyncpa [#allocation4], 0
    // Predicated region
    $region2: #{tpu_custom_call.1} parent=1 // pred_check
      _
    $region3: #{tpu_custom_call.1} parent=1 // pred_check_branch
      %11 = sbr.rel (0) target = $region5
    $region4: #{tpu_custom_call.1} parent=1 // pred_region
      %s13 = ssub.s32 128, 128
      %14 = vsyncadd [#allocation3], %s13
      %s16 = sshll.u32 [#allocation2], 4
      %s17 = int_to_ptr.vmem [resolvable:$true] %s16
      %19 = dma.hbm_to_vmem [thread:$0]  %s0, 128, %s17, [#allocation3]
    $region5: #{tpu_custom_call.1} parent=1 // pred_fallthru
      _
    // Predicated region
    $region6: #{tpu_custom_call.1} parent=1 // pred_check
      _
    $region7: #{tpu_custom_call.1} parent=1 // pred_check_branch
      %21 = sbr.rel (0) target = $region9
    $region8: #{tpu_custom_call.1} parent=1 // pred_region
      %s23 = ssub.s32 128, 128
      %24 = vsyncadd [#allocation6], %s23
      %s26 = sshll.u32 [#allocation5], 4
      %s27 = int_to_ptr.vmem [resolvable:$true] %s26
      %29 = dma.hbm_to_vmem [thread:$0]  %s1, 128, %s27, [#allocation6]
    $region9: #{tpu_custom_call.1} parent=1 // pred_fallthru
      _
    // Predicated region
    $region10: #{tpu_custom_call.1} parent=1 // pred_check
      _
    $region11: #{tpu_custom_call.1} parent=1 // pred_check_branch
      %31 = sbr.rel (0) target = $region13
    $region12: #{tpu_custom_call.1} parent=1 // pred_region
      %32 = dma.done [#allocation3], 128
    $region13: #{tpu_custom_call.1} parent=1 // pred_fallthru
      _
    // Predicated region
    $region14: #{tpu_custom_call.1} parent=1 // pred_check
      _
    $region15: #{tpu_custom_call.1} parent=1 // pred_check_branch
      %34 = sbr.rel (0) target = $region17
    $region16: #{tpu_custom_call.1} parent=1 // pred_region
      %35 = dma.done [#allocation6], 128
    $region17: #{tpu_custom_call.1} parent=1 // pred_fallthru
      _
    %v36 = vld [vmem:[#allocation2] sm:$0xff]
    %v37 = vld [vmem:[#allocation5] sm:$0xff]
    %v38 = vmul.f32 %v36, %v37
    %v39 = vrot.slane %v38, 4
    %v40 = vadd.f32 %v38, %v39
    %v41 = vrot.slane %v40, 2
    %v42 = vadd.f32 %v40, %v41
    %v43 = vrot.slane %v42, 1
    %v44 = vadd.f32 %v42, %v43
    %45 = vst [vmem:[#allocation7] sm:$0x1] %v44
    // Predicated region
    $region18: #{tpu_custom_call.1} parent=1 // pred_check
      _
    $region19: #{tpu_custom_call.1} parent=1 // pred_check_branch
      %47 = sbr.rel (0) target = $region21
    $region20: #{tpu_custom_call.1} parent=1 // pred_region
      %s49 = ssub.s32 16, 16
      %50 = vsyncadd [#allocation4], %s49
      %s52 = sshll.u32 [#allocation7], 4
      %s53 = int_to_ptr.vmem [resolvable:$true] %s52
      %55 = dma.vmem_to_hbm [thread:$0]  %s53, 16, %s2, [#allocation4]
    $region21: #{tpu_custom_call.1} parent=1 // pred_fallthru
      _
    // Predicated region
    $region22: #{tpu_custom_call.1} parent=1 // pred_check
      _
    $region23: #{tpu_custom_call.1} parent=1 // pred_check_branch
      %57 = sbr.rel (0) target = $region25
    $region24: #{tpu_custom_call.1} parent=1 // pred_region
      %58 = dma.done [#allocation4], 16
    $region25: #{tpu_custom_call.1} parent=1 // pred_fallthru
      _
    %59 = vsyncpa [#allocation3], 1
    %60 = vsyncpa [#allocation6], 1
    %61 = vsyncpa [#allocation4], 1

</llo_original>
